<compile_context>
chip_gen: v7x
topology: tpu7x:2x2x1
jax: 0.10.0
libtpu: 0.0.40
codegen_flags: <defaults>
</compile_context>

<pallas_src>
import functools

import jax
import jax.numpy as jnp
import numpy as np
from jax import lax
from jax.experimental import pallas as pl
from jax.experimental.pallas import tpu as pltpu

EPS = 1e-5


# --------------------------------------------------------------------------
# Kernel
# --------------------------------------------------------------------------
def _basic_block_kernel(x_ref, w1b_ref, w2b_ref, pa_ref, wbt_ref, bias_ref,
                        o_ref, h1pad_ref, *, dilation):
    H = x_ref.shape[1] - 2            # input is row-padded by 1 (conv1 pad=1)
    WC = x_ref.shape[2]               # W * C
    WC1 = w1b_ref.shape[2]            # W * C1
    Cr = pa_ref.shape[1]
    d = dilation

    # ---- conv3x3 #1 (+ folded BN scale) + bias + ReLU ------------------------
    # 3 row-slab matmuls; dx taps + width padding live inside w1b.
    acc1 = jnp.zeros((H, WC1), jnp.float32)
    for dy in range(3):
        slab = x_ref[0, dy:dy + H, :].astype(jnp.bfloat16)        # (H, W*C)
        acc1 = acc1 + jnp.dot(slab, w1b_ref[dy],
                              preferred_element_type=jnp.float32)
    h1 = jnp.maximum(acc1 + bias_ref[0:1, :WC1], 0.0)             # (H, W*C1)

    # ---- row-padded stash for conv2 (zero only the halo rows) ----------------
    halo = jnp.zeros((d, WC1), jnp.float32)
    h1pad_ref[0:d, :] = halo
    h1pad_ref[d + H:2 * d + H, :] = halo
    h1pad_ref[d:d + H, :] = h1

    # ---- conv3x3 #2 (dilation=d, + folded BN scale) + bias -------------------
    acc2 = jnp.zeros((H, WC), jnp.float32)
    for dy in range(3):
        slab = h1pad_ref[dy * d:dy * d + H, :].astype(jnp.bfloat16)
        acc2 = acc2 + jnp.dot(slab, w2b_ref[dy],
                              preferred_element_type=jnp.float32)
    out = acc2 + bias_ref[1:2, :]                                  # (H, W*C)

    # ---- ChannelAtt: GAP -> 1x1+ReLU -> 1x1 -> sigmoid -> scale --------------
    # Pooling over (H, W) and the per-channel broadcast of the attention map
    # are folded into pa_ref / wbt_ref on the host.
    colsum = jnp.sum(out, axis=0, keepdims=True)                   # (1, W*C)
    hid = jnp.maximum(jnp.dot(colsum, pa_ref[...],
                              preferred_element_type=jnp.float32)
                      + bias_ref[3:4, :Cr], 0.0)                   # (1, Cr)
    ca = jax.nn.sigmoid(jnp.dot(hid, wbt_ref[...],
                                preferred_element_type=jnp.float32)
                        + bias_ref[2:3, :])                        # (1, W*C)
    out = out * ca

    # ---- identity add + ReLU -------------------------------------------------
    res = jnp.maximum(out + x_ref[0, 1:1 + H, :], 0.0)             # (H, W*C)
    o_ref[0] = res.astype(o_ref.dtype)


# --------------------------------------------------------------------------
# Wrapper
# --------------------------------------------------------------------------
def basic_block_forward(x_nchw, folded, *, dilation=1):
    N, C, H, W = x_nchw.shape
    WC = W * C
    WC1 = folded["w1b"].shape[2]

    # NCHW -> (N, H, W*C), zero-pad rows by 1 for conv1.
    x = jnp.transpose(x_nchw, (0, 2, 3, 1)).astype(jnp.float32).reshape(N, H, WC)
    xrows = jnp.pad(x, ((0, 0), (1, 1), (0, 0)))                   # (N, H+2, W*C)

    kernel = functools.partial(_basic_block_kernel, dilation=dilation)

    def full(shape):
        return pl.BlockSpec(shape, lambda b, _n=len(shape): (0,) * _n)

    out = pl.pallas_call(
        kernel,
        out_shape=jax.ShapeDtypeStruct((N, H, WC), jnp.float32),
        grid_spec=pltpu.PrefetchScalarGridSpec(
            num_scalar_prefetch=0,
            grid=(N,),
            in_specs=[
                pl.BlockSpec((1, H + 2, WC), lambda b: (b, 0, 0)),
                full(folded["w1b"].shape),     # (3, W*C,  W*C1) bf16
                full(folded["w2b"].shape),     # (3, W*C1, W*C ) bf16
                full(folded["pa"].shape),      # (W*C, Cr)
                full(folded["wbt"].shape),     # (Cr, W*C)
                full(folded["bias"].shape),    # (4, W*C)
            ],
            out_specs=pl.BlockSpec((1, H, WC), lambda b: (b, 0, 0)),
            scratch_shapes=[
                pltpu.VMEM((H + 2 * dilation, WC1), jnp.float32),
            ],
        ),
        compiler_params=pltpu.CompilerParams(
            dimension_semantics=("parallel",)),
    )(xrows, folded["w1b"], folded["w2b"], folded["pa"],
      folded["wbt"], folded["bias"])

    out = out.reshape(N, H, W, C)
    return jnp.transpose(out, (0, 3, 1, 2))                        # back to NCHW


# --------------------------------------------------------------------------
# Host-side parameter folding
# --------------------------------------------------------------------------
def _conv_band(w_hwio, width, dilation):
    """Banded width-matmul weight: (3, width*Cin, width*Cout).

    band[dy, wi*Cin + ci, wo*Cout + co] = w[dy, dx, ci, co] with
    wi = wo + (dx-1)*dilation; width zero-padding handled by omission.
    """
    kh, kw, cin, cout = w_hwio.shape
    band = np.zeros((kh, width * cin, width * cout), np.float32)
    for dy in range(kh):
        for dx in range(kw):
            blk = w_hwio[dy, dx]
            for wo in range(width):
                wi = wo + (dx - 1) * dilation
                if 0 <= wi < width:
                    band[dy, wi * cin:(wi + 1) * cin,
                         wo * cout:(wo + 1) * cout] = blk
    return band


def make_raw_params(key, in_planes, reduction=1, att_reduction=4):
    """Deterministic synthetic parameters (BasicBlock.__init__ shapes)."""
    c, c1 = in_planes, in_planes // reduction
    cr = in_planes // att_reduction
    ks = jax.random.split(key, 12)
    return {
        # conv weights stored directly in HWIO layout
        "w1": 0.2 * jax.random.normal(ks[0], (3, 3, c, c1), jnp.float32),
        "g1": 1.0 + 0.1 * jax.random.normal(ks[1], (c1,), jnp.float32),
        "be1": 0.1 * jax.random.normal(ks[2], (c1,), jnp.float32),
        "m1": 0.1 * jax.random.normal(ks[3], (c1,), jnp.float32),
        "v1": 0.5 + jnp.abs(jax.random.normal(ks[4], (c1,), jnp.float32)) * 0.2,
        "w2": 0.2 * jax.random.normal(ks[5], (3, 3, c1, c), jnp.float32),
        "g2": 1.0 + 0.1 * jax.random.normal(ks[6], (c,), jnp.float32),
        "be2": 0.1 * jax.random.normal(ks[7], (c,), jnp.float32),
        "m2": 0.1 * jax.random.normal(ks[8], (c,), jnp.float32),
        "v2": 0.5 + jnp.abs(jax.random.normal(ks[9], (c,), jnp.float32)) * 0.2,
        # ChannelAtt 1x1 convs, stored as dense (in, out) matrices
        "wa": 0.3 * jax.random.normal(ks[10], (c, cr), jnp.float32),
        "ba": 0.05 * jnp.ones((cr,), jnp.float32),
        "wb": 0.3 * jax.random.normal(ks[11], (cr, c), jnp.float32),
        "bb": 0.05 * jnp.ones((c,), jnp.float32),
    }


def fold_params(raw, H, W, dilation):
    """Fold eval-mode BN, width taps, pooling and attention broadcast into
    the lane-dense operands consumed by the kernel."""
    c = raw["w1"].shape[2]
    c1 = raw["w1"].shape[3]
    cr = raw["wa"].shape[1]
    WC, WC1 = W * c, W * c1

    s1 = np.asarray(raw["g1"]) / np.sqrt(np.asarray(raw["v1"]) + EPS)
    b1 = np.asarray(raw["be1"]) - np.asarray(raw["m1"]) * s1
    s2 = np.asarray(raw["g2"]) / np.sqrt(np.asarray(raw["v2"]) + EPS)
    b2 = np.asarray(raw["be2"]) - np.asarray(raw["m2"]) * s2

    # BN scales folded into conv weight columns, then banded over width.
    band1 = _conv_band(np.asarray(raw["w1"]) * s1[None, None, None, :], W, 1)
    band2 = _conv_band(np.asarray(raw["w2"]) * s2[None, None, None, :], W, dilation)

    # Global-average-pool folded into the first attention matmul.
    pool = np.zeros((WC, c), np.float32)
    for w_ in range(W):
        for ch in range(c):
            pool[w_ * c + ch, ch] = 1.0 / (H * W)
    pa = pool @ np.asarray(raw["wa"])                      # (W*C, Cr)
    # Per-channel broadcast of the attention map folded into the second matmul.
    wbt = np.tile(np.asarray(raw["wb"]), (1, W))           # (Cr, W*C)

    # Packed bias operand: [b1 (tiled), b2 (tiled), bb (tiled), ba].
    bias = np.zeros((4, WC), np.float32)
    bias[0, :WC1] = np.tile(b1, W)
    bias[1, :] = np.tile(b2, W)
    bias[2, :] = np.tile(np.asarray(raw["bb"]), W)
    bias[3, :cr] = np.asarray(raw["ba"])

    return {
        "w1b": jnp.asarray(band1, jnp.bfloat16),
        "w2b": jnp.asarray(band2, jnp.bfloat16),
        "pa": jnp.asarray(pa, jnp.float32),
        "wbt": jnp.asarray(wbt, jnp.float32),
        "bias": jnp.asarray(bias, jnp.float32),
    }


# --------------------------------------------------------------------------
# Pure-JAX reference (eval-mode BN), mirrors the PyTorch forward
# --------------------------------------------------------------------------
def ref_forward(x_nchw, raw, *, dilation=1):
    x = jnp.transpose(x_nchw, (0, 2, 3, 1)).astype(jnp.float32)
    dn = ("NHWC", "HWIO", "NHWC")
    y = lax.conv_general_dilated(x, raw["w1"], (1, 1), ((1, 1), (1, 1)),
                                 dimension_numbers=dn)
    y = (y - raw["m1"]) / jnp.sqrt(raw["v1"] + EPS) * raw["g1"] + raw["be1"]
    y = jnp.maximum(y, 0.0)
    y = lax.conv_general_dilated(y, raw["w2"], (1, 1),
                                 ((dilation, dilation), (dilation, dilation)),
                                 rhs_dilation=(dilation, dilation),
                                 dimension_numbers=dn)
    y = (y - raw["m2"]) / jnp.sqrt(raw["v2"] + EPS) * raw["g2"] + raw["be2"]
    pooled = jnp.mean(y, axis=(1, 2), keepdims=True)
    hid = jnp.maximum(jnp.einsum("nijc,cd->nijd", pooled, raw["wa"]) + raw["ba"], 0.0)
    ca = jax.nn.sigmoid(jnp.einsum("nijd,dc->nijc", hid, raw["wb"]) + raw["bb"])
    y = y * ca
    y = jnp.maximum(y + x, 0.0)
    return jnp.transpose(y, (0, 3, 1, 2))


if __name__ == "__main__":
    N, C, H, W = 2, 4, 16, 16          # in_planes=4, reduction=1, dilation=1
    key = jax.random.PRNGKey(0)
    kx, kp = jax.random.split(key)
    x = jax.random.normal(kx, (N, C, H, W), jnp.float32)
    raw = make_raw_params(kp, in_planes=C, reduction=1, att_reduction=4)
    folded = fold_params(raw, H, W, dilation=1)

    out = jax.block_until_ready(basic_block_forward(x, folded, dilation=1))
    ref = jax.block_until_ready(ref_forward(x, raw, dilation=1))

    # bf16 MXU operands (f32 accumulation) -> tolerance loosened vs f32 version.
    np.testing.assert_allclose(np.asarray(out), np.asarray(ref),
                               rtol=3e-2, atol=3e-2)
    print("KERNEL_OK")
</pallas_src>

<mosaic_0001>
module attributes {stable_mosaic.version = 11 : i64} {
  func.func @_basic_block_kernel(%arg0: i32, %arg1: memref<1x18x64xf32, #tpu.memory_space<vmem>>, %arg2: memref<3x64x64xbf16, #tpu.memory_space<vmem>>, %arg3: memref<3x64x64xbf16, #tpu.memory_space<vmem>>, %arg4: memref<64x1xf32, #tpu.memory_space<vmem>>, %arg5: memref<1x64xf32, #tpu.memory_space<vmem>>, %arg6: memref<4x64xf32, #tpu.memory_space<vmem>>, %arg7: memref<1x16x64xf32, #tpu.memory_space<vmem>>, %arg8: memref<18x64xf32, #tpu.memory_space<vmem>>) attributes {dimension_semantics = [#tpu.dimension_semantics<parallel>], iteration_bounds = array<i64: 2>, scalar_prefetch = 0 : i64, scratch_operands = 1 : i64, tpu.core_type = #tpu.core_type<tc>, window_params = [{transform_indices = @transform_0, window_bounds = array<i64: 1, 18, 64>}, {pipeline_mode = #tpu.pipeline_mode<synchronous>, transform_indices = @transform_1, window_bounds = array<i64: 3, 64, 64>}, {pipeline_mode = #tpu.pipeline_mode<synchronous>, transform_indices = @transform_2, window_bounds = array<i64: 3, 64, 64>}, {pipeline_mode = #tpu.pipeline_mode<synchronous>, transform_indices = @transform_3, window_bounds = array<i64: 64, 1>}, {pipeline_mode = #tpu.pipeline_mode<synchronous>, transform_indices = @transform_4, window_bounds = array<i64: 1, 64>}, {pipeline_mode = #tpu.pipeline_mode<synchronous>, transform_indices = @transform_5, window_bounds = array<i64: 4, 64>}, {transform_indices = @transform_6, window_bounds = array<i64: 1, 16, 64>}]} {
    %cst = arith.constant 0.000000e+00 : f32
    %0 = vector.broadcast %cst : f32 to vector<16x64xf32>
    %c0 = arith.constant 0 : index
    %c0_0 = arith.constant 0 : index
    %c0_1 = arith.constant 0 : index
    %1 = vector.load %arg1[%c0, %c0_0, %c0_1] : memref<1x18x64xf32, #tpu.memory_space<vmem>>, vector<1x16x64xf32>
    %2 = vector.shape_cast %1 : vector<1x16x64xf32> to vector<16x64xf32>
    %3 = arith.truncf %2 : vector<16x64xf32> to vector<16x64xbf16>
    %c0_2 = arith.constant 0 : index
    %c0_3 = arith.constant 0 : index
    %c0_4 = arith.constant 0 : index
    %4 = vector.load %arg2[%c0_2, %c0_3, %c0_4] : memref<3x64x64xbf16, #tpu.memory_space<vmem>>, vector<1x64x64xbf16>
    %5 = vector.shape_cast %4 : vector<1x64x64xbf16> to vector<64x64xbf16>
    %cst_5 = arith.constant dense<0.000000e+00> : vector<16x64xf32>
    %6 = tpu.matmul %3, %5, %cst_5 {dimension_numbers = #tpu.dot_dimension_numbers<[1], [0], [0], [1], [0, 0, 1, 1], [], []>} : vector<16x64xbf16>, vector<64x64xbf16>, vector<16x64xf32> -> vector<16x64xf32>
    %7 = arith.addf %0, %6 : vector<16x64xf32>
    %c0_6 = arith.constant 0 : index
    %c1 = arith.constant 1 : index
    %c0_7 = arith.constant 0 : index
    %8 = vector.load %arg1[%c0_6, %c1, %c0_7] : memref<1x18x64xf32, #tpu.memory_space<vmem>>, vector<1x16x64xf32>
    %9 = vector.shape_cast %8 : vector<1x16x64xf32> to vector<16x64xf32>
    %10 = arith.truncf %9 : vector<16x64xf32> to vector<16x64xbf16>
    %c1_8 = arith.constant 1 : index
    %c0_9 = arith.constant 0 : index
    %c0_10 = arith.constant 0 : index
    %11 = vector.load %arg2[%c1_8, %c0_9, %c0_10] : memref<3x64x64xbf16, #tpu.memory_space<vmem>>, vector<1x64x64xbf16>
    %12 = vector.shape_cast %11 : vector<1x64x64xbf16> to vector<64x64xbf16>
    %cst_11 = arith.constant dense<0.000000e+00> : vector<16x64xf32>
    %13 = tpu.matmul %10, %12, %cst_11 {dimension_numbers = #tpu.dot_dimension_numbers<[1], [0], [0], [1], [0, 0, 1, 1], [], []>} : vector<16x64xbf16>, vector<64x64xbf16>, vector<16x64xf32> -> vector<16x64xf32>
    %14 = arith.addf %7, %13 : vector<16x64xf32>
    %c0_12 = arith.constant 0 : index
    %c2 = arith.constant 2 : index
    %c0_13 = arith.constant 0 : index
    %15 = vector.load %arg1[%c0_12, %c2, %c0_13] : memref<1x18x64xf32, #tpu.memory_space<vmem>>, vector<1x16x64xf32>
    %16 = vector.shape_cast %15 : vector<1x16x64xf32> to vector<16x64xf32>
    %17 = arith.truncf %16 : vector<16x64xf32> to vector<16x64xbf16>
    %c2_14 = arith.constant 2 : index
    %c0_15 = arith.constant 0 : index
    %c0_16 = arith.constant 0 : index
    %18 = vector.load %arg2[%c2_14, %c0_15, %c0_16] : memref<3x64x64xbf16, #tpu.memory_space<vmem>>, vector<1x64x64xbf16>
    %19 = vector.shape_cast %18 : vector<1x64x64xbf16> to vector<64x64xbf16>
    %cst_17 = arith.constant dense<0.000000e+00> : vector<16x64xf32>
    %20 = tpu.matmul %17, %19, %cst_17 {dimension_numbers = #tpu.dot_dimension_numbers<[1], [0], [0], [1], [0, 0, 1, 1], [], []>} : vector<16x64xbf16>, vector<64x64xbf16>, vector<16x64xf32> -> vector<16x64xf32>
    %21 = arith.addf %14, %20 : vector<16x64xf32>
    %c0_18 = arith.constant 0 : index
    %c0_19 = arith.constant 0 : index
    %22 = vector.load %arg6[%c0_18, %c0_19] : memref<4x64xf32, #tpu.memory_space<vmem>>, vector<1x64xf32>
    %23 = vector.broadcast %22 : vector<1x64xf32> to vector<16x64xf32>
    %24 = arith.addf %21, %23 : vector<16x64xf32>
    %cst_20 = arith.constant 0.000000e+00 : f32
    %25 = vector.broadcast %cst_20 : f32 to vector<16x64xf32>
    %26 = arith.maximumf %24, %25 : vector<16x64xf32>
    %cst_21 = arith.constant 0.000000e+00 : f32
    %27 = vector.broadcast %cst_21 : f32 to vector<1x64xf32>
    %c0_22 = arith.constant 0 : index
    %c0_23 = arith.constant 0 : index
    %28 = vector.load %arg8[%c0_22, %c0_23] : memref<18x64xf32, #tpu.memory_space<vmem>>, vector<1x64xf32>
    tpu.vector_store %arg8[%c0_22, %c0_23], %27 {strides = array<i32>} : memref<18x64xf32, #tpu.memory_space<vmem>>, vector<1x64xf32>,
    %c17 = arith.constant 17 : index
    %c0_24 = arith.constant 0 : index
    %29 = vector.load %arg8[%c17, %c0_24] : memref<18x64xf32, #tpu.memory_space<vmem>>, vector<1x64xf32>
    tpu.vector_store %arg8[%c17, %c0_24], %27 {strides = array<i32>} : memref<18x64xf32, #tpu.memory_space<vmem>>, vector<1x64xf32>,
    %c1_25 = arith.constant 1 : index
    %c0_26 = arith.constant 0 : index
    %30 = vector.load %arg8[%c1_25, %c0_26] : memref<18x64xf32, #tpu.memory_space<vmem>>, vector<16x64xf32>
    tpu.vector_store %arg8[%c1_25, %c0_26], %26 {strides = array<i32>} : memref<18x64xf32, #tpu.memory_space<vmem>>, vector<16x64xf32>,
    %cst_27 = arith.constant 0.000000e+00 : f32
    %31 = vector.broadcast %cst_27 : f32 to vector<16x64xf32>
    %c0_28 = arith.constant 0 : index
    %c0_29 = arith.constant 0 : index
    %32 = vector.load %arg8[%c0_28, %c0_29] : memref<18x64xf32, #tpu.memory_space<vmem>>, vector<16x64xf32>
    %33 = arith.truncf %32 : vector<16x64xf32> to vector<16x64xbf16>
    %c0_30 = arith.constant 0 : index
    %c0_31 = arith.constant 0 : index
    %c0_32 = arith.constant 0 : index
    %34 = vector.load %arg3[%c0_30, %c0_31, %c0_32] : memref<3x64x64xbf16, #tpu.memory_space<vmem>>, vector<1x64x64xbf16>
    %35 = vector.shape_cast %34 : vector<1x64x64xbf16> to vector<64x64xbf16>
    %cst_33 = arith.constant dense<0.000000e+00> : vector<16x64xf32>
    %36 = tpu.matmul %33, %35, %cst_33 {dimension_numbers = #tpu.dot_dimension_numbers<[1], [0], [0], [1], [0, 0, 1, 1], [], []>} : vector<16x64xbf16>, vector<64x64xbf16>, vector<16x64xf32> -> vector<16x64xf32>
    %37 = arith.addf %31, %36 : vector<16x64xf32>
    %c1_34 = arith.constant 1 : index
    %c0_35 = arith.constant 0 : index
    %38 = vector.load %arg8[%c1_34, %c0_35] : memref<18x64xf32, #tpu.memory_space<vmem>>, vector<16x64xf32>
    %39 = arith.truncf %38 : vector<16x64xf32> to vector<16x64xbf16>
    %c1_36 = arith.constant 1 : index
    %c0_37 = arith.constant 0 : index
    %c0_38 = arith.constant 0 : index
    %40 = vector.load %arg3[%c1_36, %c0_37, %c0_38] : memref<3x64x64xbf16, #tpu.memory_space<vmem>>, vector<1x64x64xbf16>
    %41 = vector.shape_cast %40 : vector<1x64x64xbf16> to vector<64x64xbf16>
    %cst_39 = arith.constant dense<0.000000e+00> : vector<16x64xf32>
    %42 = tpu.matmul %39, %41, %cst_39 {dimension_numbers = #tpu.dot_dimension_numbers<[1], [0], [0], [1], [0, 0, 1, 1], [], []>} : vector<16x64xbf16>, vector<64x64xbf16>, vector<16x64xf32> -> vector<16x64xf32>
    %43 = arith.addf %37, %42 : vector<16x64xf32>
    %c2_40 = arith.constant 2 : index
    %c0_41 = arith.constant 0 : index
    %44 = vector.load %arg8[%c2_40, %c0_41] : memref<18x64xf32, #tpu.memory_space<vmem>>, vector<16x64xf32>
    %45 = arith.truncf %44 : vector<16x64xf32> to vector<16x64xbf16>
    %c2_42 = arith.constant 2 : index
    %c0_43 = arith.constant 0 : index
    %c0_44 = arith.constant 0 : index
    %46 = vector.load %arg3[%c2_42, %c0_43, %c0_44] : memref<3x64x64xbf16, #tpu.memory_space<vmem>>, vector<1x64x64xbf16>
    %47 = vector.shape_cast %46 : vector<1x64x64xbf16> to vector<64x64xbf16>
    %cst_45 = arith.constant dense<0.000000e+00> : vector<16x64xf32>
    %48 = tpu.matmul %45, %47, %cst_45 {dimension_numbers = #tpu.dot_dimension_numbers<[1], [0], [0], [1], [0, 0, 1, 1], [], []>} : vector<16x64xbf16>, vector<64x64xbf16>, vector<16x64xf32> -> vector<16x64xf32>
    %49 = arith.addf %43, %48 : vector<16x64xf32>
    %c1_46 = arith.constant 1 : index
    %c0_47 = arith.constant 0 : index
    %50 = vector.load %arg6[%c1_46, %c0_47] : memref<4x64xf32, #tpu.memory_space<vmem>>, vector<1x64xf32>
    %51 = vector.broadcast %50 : vector<1x64xf32> to vector<16x64xf32>
    %52 = arith.addf %49, %51 : vector<16x64xf32>
    %cst_48 = arith.constant dense<0.000000e+00> : vector<64xf32>
    %53 = vector.multi_reduction <add>, %52, %cst_48 [0] : vector<16x64xf32> to vector<64xf32>
    %54 = vector.shape_cast %53 : vector<64xf32> to vector<1x64xf32>
    %c0_49 = arith.constant 0 : index
    %c0_50 = arith.constant 0 : index
    %55 = vector.load %arg4[%c0_49, %c0_50] : memref<64x1xf32, #tpu.memory_space<vmem>>, vector<64x1xf32>
    %cst_51 = arith.constant dense<0.000000e+00> : vector<1x1xf32>
    %56 = tpu.matmul %54, %55, %cst_51 {dimension_numbers = #tpu.dot_dimension_numbers<[1], [0], [0], [1], [0, 0, 1, 1], [], []>} : vector<1x64xf32>, vector<64x1xf32>, vector<1x1xf32> -> vector<1x1xf32>
    %c3 = arith.constant 3 : index
    %c0_52 = arith.constant 0 : index
    %57 = vector.load %arg6[%c3, %c0_52] : memref<4x64xf32, #tpu.memory_space<vmem>>, vector<1x1xf32>
    %58 = arith.addf %56, %57 : vector<1x1xf32>
    %cst_53 = arith.constant 0.000000e+00 : f32
    %59 = vector.broadcast %cst_53 : f32 to vector<1x1xf32>
    %60 = arith.maximumf %58, %59 : vector<1x1xf32>
    %c0_54 = arith.constant 0 : index
    %c0_55 = arith.constant 0 : index
    %61 = vector.load %arg5[%c0_54, %c0_55] : memref<1x64xf32, #tpu.memory_space<vmem>>, vector<1x64xf32>
    %cst_56 = arith.constant dense<0.000000e+00> : vector<1x64xf32>
    %62 = tpu.matmul %60, %61, %cst_56 {dimension_numbers = #tpu.dot_dimension_numbers<[1], [0], [0], [1], [0, 0, 1, 1], [], []>} : vector<1x1xf32>, vector<1x64xf32>, vector<1x64xf32> -> vector<1x64xf32>
    %c2_57 = arith.constant 2 : index
    %c0_58 = arith.constant 0 : index
    %63 = vector.load %arg6[%c2_57, %c0_58] : memref<4x64xf32, #tpu.memory_space<vmem>>, vector<1x64xf32>
    %64 = arith.addf %62, %63 : vector<1x64xf32>
    %65 = arith.negf %64 : vector<1x64xf32>
    %66 = math.exp %65 : vector<1x64xf32>
    %cst_59 = arith.constant 1.000000e+00 : f32
    %67 = vector.broadcast %cst_59 : f32 to vector<1x64xf32>
    %68 = arith.addf %67, %66 : vector<1x64xf32>
    %69 = arith.divf %67, %68 : vector<1x64xf32>
    %70 = vector.broadcast %69 : vector<1x64xf32> to vector<16x64xf32>
    %71 = arith.mulf %52, %70 : vector<16x64xf32>
    %c0_60 = arith.constant 0 : index
    %c1_61 = arith.constant 1 : index
    %c0_62 = arith.constant 0 : index
    %72 = vector.load %arg1[%c0_60, %c1_61, %c0_62] : memref<1x18x64xf32, #tpu.memory_space<vmem>>, vector<1x16x64xf32>
    %73 = vector.shape_cast %72 : vector<1x16x64xf32> to vector<16x64xf32>
    %74 = arith.addf %71, %73 : vector<16x64xf32>
    %cst_63 = arith.constant 0.000000e+00 : f32
    %75 = vector.broadcast %cst_63 : f32 to vector<16x64xf32>
    %76 = arith.maximumf %74, %75 : vector<16x64xf32>
    %c0_64 = arith.constant 0 : index
    %c0_65 = arith.constant 0 : index
    %c0_66 = arith.constant 0 : index
    %77 = vector.load %arg7[%c0_64, %c0_65, %c0_66] : memref<1x16x64xf32, #tpu.memory_space<vmem>>, vector<1x16x64xf32>
    %78 = vector.shape_cast %77 : vector<1x16x64xf32> to vector<16x64xf32>
    %79 = vector.shape_cast %76 : vector<16x64xf32> to vector<1x16x64xf32>
    tpu.vector_store %arg7[%c0_64, %c0_65, %c0_66], %79 {strides = array<i32>} : memref<1x16x64xf32, #tpu.memory_space<vmem>>, vector<1x16x64xf32>,
    return
  }
  func.func @transform_0(%arg0: i32) -> (i32, i32, i32) {
    %c0_i32 = arith.constant 0 : i32
    %c0_i32_0 = arith.constant 0 : i32
    %c0_i32_1 = arith.constant 0 : i32
    return %arg0, %c0_i32, %c0_i32_0 : i32, i32, i32
  }
  func.func @transform_1(%arg0: i32) -> (i32, i32, i32) {
    %c0_i32 = arith.constant 0 : i32
    %c0_i32_0 = arith.constant 0 : i32
    %c0_i32_1 = arith.constant 0 : i32
    %c0_i32_2 = arith.constant 0 : i32
    return %c0_i32, %c0_i32_0, %c0_i32_1 : i32, i32, i32
  }
  func.func @transform_2(%arg0: i32) -> (i32, i32, i32) {
    %c0_i32 = arith.constant 0 : i32
    %c0_i32_0 = arith.constant 0 : i32
    %c0_i32_1 = arith.constant 0 : i32
    %c0_i32_2 = arith.constant 0 : i32
    return %c0_i32, %c0_i32_0, %c0_i32_1 : i32, i32, i32
  }
  func.func @transform_3(%arg0: i32) -> (i32, i32) {
    %c0_i32 = arith.constant 0 : i32
    %c0_i32_0 = arith.constant 0 : i32
    %c0_i32_1 = arith.constant 0 : i32
    return %c0_i32, %c0_i32_0 : i32, i32
  }
  func.func @transform_4(%arg0: i32) -> (i32, i32) {
    %c0_i32 = arith.constant 0 : i32
    %c0_i32_0 = arith.constant 0 : i32
    %c0_i32_1 = arith.constant 0 : i32
    return %c0_i32, %c0_i32_0 : i32, i32
  }
  func.func @transform_5(%arg0: i32) -> (i32, i32) {
    %c0_i32 = arith.constant 0 : i32
    %c0_i32_0 = arith.constant 0 : i32
    %c0_i32_1 = arith.constant 0 : i32
    return %c0_i32, %c0_i32_0 : i32, i32
  }
  func.func @transform_6(%arg0: i32) -> (i32, i32, i32) {
    %c0_i32 = arith.constant 0 : i32
    %c0_i32_0 = arith.constant 0 : i32
    %c0_i32_1 = arith.constant 0 : i32
    return %arg0, %c0_i32, %c0_i32_0 : i32, i32, i32
  }
}

</mosaic_0001>

<llo_original>
// kernel: tpu_custom_call.1
$region0: #{tpu_custom_call.1}
  #allocation0 [shape = 'u32[]', space=smem, size = 0x4, offset = 0x4, fixed_abs, tag = 'smem constant byte address 0x4 - core index']
  #allocation1 [shape = 'u32[144,128]{1,0:T(1,128)}', space=vmem, size = 0x12000, scoped, tag = 'internal scratch']
  #allocation2 [shape = 'f32[18,64]{1,0:T(8,128)}', space=vmem, size = 0x3000, scoped, tag = 'scratch operand']
  %s0 = inlined_call_operand.vmem [shape: f32[2,18,64], index: 0, kind: input, shape index: {}]
  %s1 = inlined_call_operand.vmem [shape: bf16[3,64,64], index: 1, kind: input, shape index: {}]
  %s2 = inlined_call_operand.hbm [shape: bf16[3,64,64], index: 2, kind: input, shape index: {}]
  %s3 = inlined_call_operand.vmem [shape: f32[64,1], index: 3, kind: input, shape index: {}]
  %s4 = inlined_call_operand.vmem [shape: f32[1,64], index: 4, kind: input, shape index: {}]
  %s5 = inlined_call_operand.vmem [shape: f32[4,64], index: 5, kind: input, shape index: {}]
  %s6 = inlined_call_operand.hbm [shape: f32[2,16,64], index: 6, kind: output, shape index: {}]
  %s7 = sld [smem:[#allocation0]]
  $region61: #{tpu_custom_call.1} parent=0
    _
  %s9 = ssub.s32 1, %s7
  %s10 = scalar_select 0, %s9, %s7
  $region1: #{tpu_custom_call.1} parent=0
    #allocation3 [shape = 'u8[49152]{0}', space=vmem, size = 0xc000, scoped, tag = 'input window, operand 2, single buffered']
    #allocation4 [shape = 's32[2]{0}', space=sflag, size = 0x8, scoped, tag = 'scoped memory for tpu_custom_call.1']
    #allocation5 [shape = 's32[2]{0}', space=sflag, size = 0x8, scoped, tag = 'scoped memory for tpu_custom_call.1']
    #allocation6 [shape = 'u8[16384]{0}', space=vmem, size = 0x4000, scoped, tag = 'output window, operand 0']
    %11 = vsyncpa [#allocation4], 0
    %12 = vsyncpa [#allocation5], 0
    %s13 = scalar_lea.sflag [#allocation5], 1
    %14 = vsyncpa %s13, 0
    loop: start=0, step=1, limit=4
    $region2: #{tpu_custom_call.1} parent=1 // loop_pre_header
      _
    $region3: #{tpu_custom_call.1} parent=1 // loop_header
      %s16 = sphi 0, %s20
      %p17 = scmp.ge.s32.totalorder %s16, 4
      %s26 = sphi 0, %s28
      %s29 = sphi 0, %s26
      %s30 = sphi 0, %s29
      %s46 = sphi 0, %s30
      %s50 = sphi 0, %s50
      %s52 = sphi 0, %s50
      %s53 = sphi 0, %s52
      %s67 = sphi 0, %s53
      %s71 = sphi 0, %s71
      %s73 = sphi 0, %s71
      %s74 = sphi 0, %s73
      %s88 = sphi 0, %s74
      %s92 = sphi 0, %s92
      %s94 = sphi 0, %s92
      %s95 = sphi 0, %s94
      %s109 = sphi 0, %s95
      %s113 = sphi 0, %s113
      %s115 = sphi 0, %s113
      %s116 = sphi 0, %s115
      %s130 = sphi 0, %s116
      %s134 = sphi 0, %s134
      %s136 = sphi 0, %s134
      %s137 = sphi 0, %s136
      %s151 = sphi 0, %s137
      %s157 = sphi 0, %s159
      %s160 = sphi 0, %s157
      %s161 = sphi 0, %s160
      %s177 = sphi 0, %s161
    $region4: #{tpu_custom_call.1} parent=1 // loop_header_branch
      %19 = sbr.rel (%p17) target = $region8
    $region5: #{tpu_custom_call.1} parent=1 // loop_body
      %s21 = ssub.s32 %s16, 1
      %s22 = ssub.s32 %s16, 2
      %s23 = sadd.s32 %s16, 1
      %s24 = ssub.s32 %s16, %s23
      %p25 = scmp.eq.s32.totalorder %s24, 0
      %s27 = sadd.s32 %s26, 1
      %s28 = scalar_select %p25, %s26, %s27
      %p31 = pneg %p25
      %p32 = scmp.eq.s32.totalorder %s16, 1
      %p33 = por %p31, %p32
      %p34 = scmp.ne.s32.totalorder %s26, %s29
      %p35 = scmp.eq.s32.totalorder %s16, 0
      %p36 = por %p34, %p35
      %p37 = scmp.ne.s32.totalorder %s26, %s29
      %p38 = scmp.eq.s32.totalorder %s21, 1
      %p39 = por %p37, %p38
      %p40 = scmp.ne.s32.totalorder %s29, %s30
      %p41 = scmp.eq.s32.totalorder %s21, 0
      %p42 = por %p40, %p41
      %p43 = scmp.ne.s32.totalorder %s29, %s30
      %p44 = scmp.eq.s32.totalorder %s22, 1
      %p45 = por %p43, %p44
      %p47 = scmp.ne.s32.totalorder %s30, %s46
      %p48 = scmp.eq.s32.totalorder %s22, 0
      %p49 = por %p47, %p48
      %s51 = sadd.s32 %s50, 1
      %p54 = scmp.eq.s32.totalorder %s16, 1
      %p55 = scmp.ne.s32.totalorder %s50, %s52
      %p56 = scmp.eq.s32.totalorder %s16, 0
      %p57 = por %p55, %p56
      %p58 = scmp.ne.s32.totalorder %s50, %s52
      %p59 = scmp.eq.s32.totalorder %s21, 1
      %p60 = por %p58, %p59
      %p61 = scmp.ne.s32.totalorder %s52, %s53
      %p62 = scmp.eq.s32.totalorder %s21, 0
      %p63 = por %p61, %p62
      %p64 = scmp.ne.s32.totalorder %s52, %s53
      %p65 = scmp.eq.s32.totalorder %s22, 1
      %p66 = por %p64, %p65
      %p68 = scmp.ne.s32.totalorder %s53, %s67
      %p69 = scmp.eq.s32.totalorder %s22, 0
      %p70 = por %p68, %p69
      %s72 = sadd.s32 %s71, 1
      %p75 = scmp.eq.s32.totalorder %s16, 1
      %p76 = scmp.ne.s32.totalorder %s71, %s73
      %p77 = scmp.eq.s32.totalorder %s16, 0
      %p78 = por %p76, %p77
      %p79 = scmp.ne.s32.totalorder %s71, %s73
      %p80 = scmp.eq.s32.totalorder %s21, 1
      %p81 = por %p79, %p80
      %p82 = scmp.ne.s32.totalorder %s73, %s74
      %p83 = scmp.eq.s32.totalorder %s21, 0
      %p84 = por %p82, %p83
      %p85 = scmp.ne.s32.totalorder %s73, %s74
      %p86 = scmp.eq.s32.totalorder %s22, 1
      %p87 = por %p85, %p86
      %p89 = scmp.ne.s32.totalorder %s74, %s88
      %p90 = scmp.eq.s32.totalorder %s22, 0
      %p91 = por %p89, %p90
      %s93 = sadd.s32 %s92, 1
      %p96 = scmp.eq.s32.totalorder %s16, 1
      %p97 = scmp.ne.s32.totalorder %s92, %s94
      %p98 = scmp.eq.s32.totalorder %s16, 0
      %p99 = por %p97, %p98
      %p100 = scmp.ne.s32.totalorder %s92, %s94
      %p101 = scmp.eq.s32.totalorder %s21, 1
      %p102 = por %p100, %p101
      %p103 = scmp.ne.s32.totalorder %s94, %s95
      %p104 = scmp.eq.s32.totalorder %s21, 0
      %p105 = por %p103, %p104
      %p106 = scmp.ne.s32.totalorder %s94, %s95
      %p107 = scmp.eq.s32.totalorder %s22, 1
      %p108 = por %p106, %p107
      %p110 = scmp.ne.s32.totalorder %s95, %s109
      %p111 = scmp.eq.s32.totalorder %s22, 0
      %p112 = por %p110, %p111
      %s114 = sadd.s32 %s113, 1
      %p117 = scmp.eq.s32.totalorder %s16, 1
      %p118 = scmp.ne.s32.totalorder %s113, %s115
      %p119 = scmp.eq.s32.totalorder %s16, 0
      %p120 = por %p118, %p119
      %p121 = scmp.ne.s32.totalorder %s113, %s115
      %p122 = scmp.eq.s32.totalorder %s21, 1
      %p123 = por %p121, %p122
      %p124 = scmp.ne.s32.totalorder %s115, %s116
      %p125 = scmp.eq.s32.totalorder %s21, 0
      %p126 = por %p124, %p125
      %p127 = scmp.ne.s32.totalorder %s115, %s116
      %p128 = scmp.eq.s32.totalorder %s22, 1
      %p129 = por %p127, %p128
      %p131 = scmp.ne.s32.totalorder %s116, %s130
      %p132 = scmp.eq.s32.totalorder %s22, 0
      %p133 = por %p131, %p132
      %s135 = sadd.s32 %s134, 1
      %p138 = scmp.eq.s32.totalorder %s16, 1
      %p139 = scmp.ne.s32.totalorder %s134, %s136
      %p140 = scmp.eq.s32.totalorder %s16, 0
      %p141 = por %p139, %p140
      %p142 = scmp.ne.s32.totalorder %s134, %s136
      %p143 = scmp.eq.s32.totalorder %s21, 1
      %p144 = por %p142, %p143
      %p145 = scmp.ne.s32.totalorder %s136, %s137
      %p146 = scmp.eq.s32.totalorder %s21, 0
      %p147 = por %p145, %p146
      %p148 = scmp.ne.s32.totalorder %s136, %s137
      %p149 = scmp.eq.s32.totalorder %s22, 1
      %p150 = por %p148, %p149
      %p152 = scmp.ne.s32.totalorder %s137, %s151
      %p153 = scmp.eq.s32.totalorder %s22, 0
      %p154 = por %p152, %p153
      %s155 = ssub.s32 %s16, %s23
      %p156 = scmp.eq.s32.totalorder %s155, 0
      %s158 = sadd.s32 %s157, 1
      %s159 = scalar_select %p156, %s157, %s158
      %p162 = pneg %p156
      %p163 = scmp.eq.s32.totalorder %s16, 1
      %p164 = por %p162, %p163
      %p165 = scmp.ne.s32.totalorder %s157, %s160
      %p166 = scmp.eq.s32.totalorder %s16, 0
      %p167 = por %p165, %p166
      %p168 = scmp.ne.s32.totalorder %s157, %s160
      %p169 = scmp.eq.s32.totalorder %s21, 1
      %p170 = por %p168, %p169
      %p171 = scmp.ne.s32.totalorder %s160, %s161
      %p172 = scmp.eq.s32.totalorder %s21, 0
      %p173 = por %p171, %p172
      %p174 = scmp.ne.s32.totalorder %s160, %s161
      %p175 = scmp.eq.s32.totalorder %s22, 1
      %p176 = por %p174, %p175
      %p178 = scmp.ne.s32.totalorder %s161, %s177
      %p179 = scmp.eq.s32.totalorder %s22, 0
      %p180 = por %p178, %p179
      %p181 = scmp.le.s32.totalorder 1, %s16
      %p182 = scmp.lt.s32.totalorder %s16, 3
      %p183 = pnand %p181, %p182
      %p184 = pneg %p183
      // Predicated region
      $region9: #{tpu_custom_call.1} parent=5 // pred_check
        _
      $region10: #{tpu_custom_call.1} parent=5 // pred_check_branch
        %186 = sbr.rel (%p183) target = $region12
      $region11: #{tpu_custom_call.1} parent=5 // pred_region
        %s187 = ssub.s32 %s16, 1
        // Predicated region
        $region13: #{tpu_custom_call.1} parent=11 // pred_check
          %p188 = pneg %p63
        $region14: #{tpu_custom_call.1} parent=11 // pred_check_branch
          %190 = sbr.rel (%p188) target = $region16
        $region15: #{tpu_custom_call.1} parent=11 // pred_region
          _
        $region16: #{tpu_custom_call.1} parent=11 // pred_fallthru
          _
        // Predicated region
        $region17: #{tpu_custom_call.1} parent=11 // pred_check
          %p191 = pneg %p84
        $region18: #{tpu_custom_call.1} parent=11 // pred_check_branch
          %193 = sbr.rel (%p191) target = $region20
        $region19: #{tpu_custom_call.1} parent=11 // pred_region
          %s195 = ssub.s32 1536, 1536
          %196 = vsyncadd [#allocation4], %s195
          %s197 = sshll.u32 [#allocation3], 4
          %s198 = int_to_ptr.vmem [resolvable:$true] %s197
          %203 = dma.hbm_to_vmem [thread:$0]  %s2, 1536, %s198, [#allocation4], 64, 64, 4
        $region20: #{tpu_custom_call.1} parent=11 // pred_fallthru
          _
        // Predicated region
        $region21: #{tpu_custom_call.1} parent=11 // pred_check
          %p204 = pneg %p105
        $region22: #{tpu_custom_call.1} parent=11 // pred_check_branch
          %206 = sbr.rel (%p204) target = $region24
        $region23: #{tpu_custom_call.1} parent=11 // pred_region
          _
        $region24: #{tpu_custom_call.1} parent=11 // pred_fallthru
          _
        // Predicated region
        $region25: #{tpu_custom_call.1} parent=11 // pred_check
          %p207 = pneg %p126
        $region26: #{tpu_custom_call.1} parent=11 // pred_check_branch
          %209 = sbr.rel (%p207) target = $region28
        $region27: #{tpu_custom_call.1} parent=11 // pred_region
          _
        $region28: #{tpu_custom_call.1} parent=11 // pred_fallthru
          _
        // Predicated region
        $region29: #{tpu_custom_call.1} parent=11 // pred_check
          %p210 = pneg %p147
        $region30: #{tpu_custom_call.1} parent=11 // pred_check_branch
          %212 = sbr.rel (%p210) target = $region32
        $region31: #{tpu_custom_call.1} parent=11 // pred_region
          _
        $region32: #{tpu_custom_call.1} parent=11 // pred_fallthru
          _
      $region12: #{tpu_custom_call.1} parent=5 // pred_fallthru
        _
      %p213 = scmp.lt.s32.totalorder %s16, 2
      // Predicated region
      $region33: #{tpu_custom_call.1} parent=5 // pred_check
        %p214 = pneg %p213
      $region34: #{tpu_custom_call.1} parent=5 // pred_check_branch
        %216 = sbr.rel (%p214) target = $region36
      $region35: #{tpu_custom_call.1} parent=5 // pred_region
        // Predicated region
        $region37: #{tpu_custom_call.1} parent=35 // pred_check
          %p217 = pneg %p36
        $region38: #{tpu_custom_call.1} parent=35 // pred_check_branch
          %219 = sbr.rel (%p217) target = $region40
        $region39: #{tpu_custom_call.1} parent=35 // pred_region
          %p220 = scmp.lt.s32.totalorder %s16, 1
          %s221 = scalar_select %p220, %s16, 1
          %s222 = smul.addr %s221, 3
          %s223 = smul.addr %s222, 8
          %s224 = scalar_lea.vmem %s0, %s223
        $region40: #{tpu_custom_call.1} parent=35 // pred_fallthru
          _
      $region36: #{tpu_custom_call.1} parent=5 // pred_fallthru
        _
      %p225 = scmp.le.s32.totalorder 1, %s16
      %p226 = scmp.lt.s32.totalorder %s16, 3
      %p227 = pnand %p225, %p226
      %p228 = pneg %p227
      // Predicated region
      $region41: #{tpu_custom_call.1} parent=5 // pred_check
        _
      $region42: #{tpu_custom_call.1} parent=5 // pred_check_branch
        %230 = sbr.rel (%p227) target = $region44
      $region43: #{tpu_custom_call.1} parent=5 // pred_region
        %s231 = ssub.s32 %s16, 1
        // Predicated region
        $region45: #{tpu_custom_call.1} parent=43 // pred_check
          %p232 = pneg %p84
        $region46: #{tpu_custom_call.1} parent=43 // pred_check_branch
          %234 = sbr.rel (%p232) target = $region48
        $region47: #{tpu_custom_call.1} parent=43 // pred_region
          %235 = dma.done [#allocation4], 1536
        $region48: #{tpu_custom_call.1} parent=43 // pred_fallthru
          _
        %p236 = scmp.lt.s32.totalorder %s21, 1
        %s237 = scalar_select %p236, %s21, 1
        %s238 = smul.addr %s237, 3
        %s239 = smul.addr %s238, 8
        %s240 = scalar_lea.vmem %s0, %s239
        %p241 = pneg %p42
        %p242 = pneg %p39
        %p243 = pneg %p63
        %p244 = pneg %p60
        %p245 = pneg %p84
        %p246 = pneg %p81
        %p247 = pneg %p105
        %p248 = pneg %p102
        %p249 = pneg %p126
        %p250 = pneg %p123
        %p251 = pneg %p147
        %p252 = pneg %p144
        %p253 = pneg %p173
        %p254 = pneg %p170
        %s255 = sand.u32 %s160, 1
        %s256 = scalar_lea.sflag [#allocation5], %s255
        %s257 = sand.u32 %s160, 1
        %s258 = smul.addr %s257, 16
        %s259 = scalar_lea.vmem [#allocation6], %s258
        %p260 = scmp.lt.s32.totalorder %s21, 1
        %s261 = scalar_select %p260, %s21, 1
        %s262 = smul.addr %s261, 3
        %s263 = smul.addr %s262, 8
        %s264 = scalar_lea.vmem %s0, %s263
        %v266 = vld [vmem:[%s264] sm:$0xff]
        %v267 = vld [vmem:[%s264 + $0x8] sm:$0xff]
        %v268 = vpack.c.bf16 %v267, %v266
        %v269 = vld [vmem:[%s1] sm:$0xf]
        %v270 = vld [vmem:[%s1 + $0x4] sm:$0xf]
        %v271 = vld [vmem:[%s1 + $0x8] sm:$0xf]
        %v272 = vld [vmem:[%s1 + $0xc] sm:$0xf]
        %v273 = vld [vmem:[%s1 + $0x10] sm:$0xf]
        %v274 = vld [vmem:[%s1 + $0x14] sm:$0xf]
        %v275 = vld [vmem:[%s1 + $0x18] sm:$0xf]
        %v276 = vld [vmem:[%s1 + $0x1c] sm:$0xf]
        %v277 = vld [vmem:[%s264 + $0x1] sm:$0xff]
        %v278 = vld [vmem:[%s264 + $0x9] sm:$0xff]
        %v279 = vpack.c.bf16 %v278, %v277
        %s280 = scalar_lea.vmem %s1, 32
        %v281 = vld [vmem:[%s280] sm:$0xf]
        %v282 = vld [vmem:[%s280 + $0x4] sm:$0xf]
        %v283 = vld [vmem:[%s280 + $0x8] sm:$0xf]
        %v284 = vld [vmem:[%s280 + $0xc] sm:$0xf]
        %v285 = vld [vmem:[%s280 + $0x10] sm:$0xf]
        %v286 = vld [vmem:[%s280 + $0x14] sm:$0xf]
        %v287 = vld [vmem:[%s280 + $0x18] sm:$0xf]
        %v288 = vld [vmem:[%s280 + $0x1c] sm:$0xf]
        %v297 = vunpack.c.l.b16 %v281
        %v298 = vunpack.c.l.b16 %v282
        %v299 = vunpack.c.l.b16 %v283
        %v300 = vunpack.c.l.b16 %v284
        %v301 = vunpack.c.l.b16 %v285
        %v302 = vunpack.c.l.b16 %v286
        %v303 = vunpack.c.l.b16 %v287
        %v304 = vunpack.c.l.b16 %v288
        %v305 = vpack.c.b16 %v298, %v297
        %v306 = vpack.c.b16 %v300, %v299
        %v307 = vpack.c.b16 %v302, %v301
        %v308 = vpack.c.b16 %v304, %v303
        %vm313 = vcmask 523264
        %v315 = vsel %vm313, %v279, 0
        %317 = vmatprep.subr.bf16.mxu0 0
        %318 = vmatpush1.bf16.msra.mxu0 %v305
        %319 = vmatprep.subr.bf16.mxu0 0
        %320 = vmatpush1.bf16.msra.mxu0 %v306
        %321 = vmatprep.subr.bf16.mxu0 0
        %322 = vmatpush1.bf16.msra.mxu0 %v307
        %323 = vmatprep.subr.bf16.mxu0 0
        %324 = vmatpush1.bf16.msra.mxu0 %v308
        %325 = vmatprep.subr.bf16.mxu0 0
        %326 = vmatpush1.bf16.msra.mxu0 0
        %327 = vmatprep.subr.bf16.mxu0 0
        %328 = vmatpush1.bf16.msra.mxu0 0
        %329 = vmatprep.subr.bf16.mxu0 0
        %330 = vmatpush1.bf16.msra.mxu0 0
        %331 = vmatprep.subr.bf16.mxu0 0
        %332 = vmatpush1.bf16.msra.mxu0 0
        %333 = vmatprep.subr.bf16.mxu0 0
        %334 = vmatpush1.bf16.msra.mxu0 0
        %335 = vmatprep.subr.bf16.mxu0 0
        %336 = vmatpush1.bf16.msra.mxu0 0
        %337 = vmatprep.subr.bf16.mxu0 0
        %338 = vmatpush1.bf16.msra.mxu0 0
        %339 = vmatprep.subr.bf16.mxu0 0
        %340 = vmatpush1.bf16.msra.mxu0 0
        %341 = vmatprep.subr.bf16.mxu0 0
        %342 = vmatpush1.bf16.msra.mxu0 0
        %343 = vmatprep.subr.bf16.mxu0 0
        %344 = vmatpush1.bf16.msra.mxu0 0
        %345 = vmatprep.subr.bf16.mxu0 0
        %346 = vmatpush1.bf16.msra.mxu0 0
        %347 = vmatprep.subr.bf16.mxu0 0
        %348 = vmatpush1.bf16.msra.mxu0 0
        %349 = vmatprep.mubr.bf16.mxu0 0
        %350 = vmatmul.mubr.bf16.gmra.mrb[0].mxu0 %v315
        %v351 = vpop.f32.mrb[0].mxu0
        %v352 = vadd.f32 0.0, %v351
        %v353 = vpop.f32.mrb[0].mxu0
        %v354 = vpop.f32.mrb[0].mxu0
        %v355 = vadd.f32 0.0, %v354
        %v356 = vpop.f32.mrb[0].mxu0
        %357 = vdwg.mxu0
        %v366 = vunpack.c.l.b16 %v269
        %v367 = vunpack.c.l.b16 %v270
        %v368 = vunpack.c.l.b16 %v271
        %v369 = vunpack.c.l.b16 %v272
        %v370 = vunpack.c.l.b16 %v273
        %v371 = vunpack.c.l.b16 %v274
        %v372 = vunpack.c.l.b16 %v275
        %v373 = vunpack.c.l.b16 %v276
        %v374 = vpack.c.b16 %v367, %v366
        %v375 = vpack.c.b16 %v369, %v368
        %v376 = vpack.c.b16 %v371, %v370
        %v377 = vpack.c.b16 %v373, %v372
        %v383 = vsel %vm313, %v268, 0
        %385 = vmatprep.subr.bf16.mxu0 0
        %386 = vmatpush1.bf16.msra.mxu0 %v374
        %387 = vmatprep.subr.bf16.mxu0 0
        %388 = vmatpush1.bf16.msra.mxu0 %v375
        %389 = vmatprep.subr.bf16.mxu0 0
        %390 = vmatpush1.bf16.msra.mxu0 %v376
        %391 = vmatprep.subr.bf16.mxu0 0
        %392 = vmatpush1.bf16.msra.mxu0 %v377
        %393 = vmatprep.subr.bf16.mxu0 0
        %394 = vmatpush1.bf16.msra.mxu0 0
        %395 = vmatprep.subr.bf16.mxu0 0
        %396 = vmatpush1.bf16.msra.mxu0 0
        %397 = vmatprep.subr.bf16.mxu0 0
        %398 = vmatpush1.bf16.msra.mxu0 0
        %399 = vmatprep.subr.bf16.mxu0 0
        %400 = vmatpush1.bf16.msra.mxu0 0
        %401 = vmatprep.subr.bf16.mxu0 0
        %402 = vmatpush1.bf16.msra.mxu0 0
        %403 = vmatprep.subr.bf16.mxu0 0
        %404 = vmatpush1.bf16.msra.mxu0 0
        %405 = vmatprep.subr.bf16.mxu0 0
        %406 = vmatpush1.bf16.msra.mxu0 0
        %407 = vmatprep.subr.bf16.mxu0 0
        %408 = vmatpush1.bf16.msra.mxu0 0
        %409 = vmatprep.subr.bf16.mxu0 0
        %410 = vmatpush1.bf16.msra.mxu0 0
        %411 = vmatprep.subr.bf16.mxu0 0
        %412 = vmatpush1.bf16.msra.mxu0 0
        %413 = vmatprep.subr.bf16.mxu0 0
        %414 = vmatpush1.bf16.msra.mxu0 0
        %415 = vmatprep.subr.bf16.mxu0 0
        %416 = vmatpush1.bf16.msra.mxu0 0
        %417 = vmatprep.mubr.bf16.mxu0 0
        %418 = vmatmul.mubr.bf16.gmra.mrb[0].mxu0 %v383
        %v419 = vpop.f32.mrb[0].mxu0
        %v420 = vadd.f32 %v352, %v419
        %v421 = vpop.f32.mrb[0].mxu0
        %v422 = vpop.f32.mrb[0].mxu0
        %v423 = vadd.f32 %v355, %v422
        %v424 = vpop.f32.mrb[0].mxu0
        %425 = vdwg.mxu0
        %v426 = vld [vmem:[%s264 + $0x2] sm:$0xff]
        %v427 = vld [vmem:[%s264 + $0xa] sm:$0xff]
        %v428 = vpack.c.bf16 %v427, %v426
        %s429 = scalar_lea.vmem %s1, 64
        %v430 = vld [vmem:[%s429] sm:$0xf]
        %v431 = vld [vmem:[%s429 + $0x4] sm:$0xf]
        %v432 = vld [vmem:[%s429 + $0x8] sm:$0xf]
        %v433 = vld [vmem:[%s429 + $0xc] sm:$0xf]
        %v434 = vld [vmem:[%s429 + $0x10] sm:$0xf]
        %v435 = vld [vmem:[%s429 + $0x14] sm:$0xf]
        %v436 = vld [vmem:[%s429 + $0x18] sm:$0xf]
        %v437 = vld [vmem:[%s429 + $0x1c] sm:$0xf]
        %v446 = vunpack.c.l.b16 %v430
        %v447 = vunpack.c.l.b16 %v431
        %v448 = vunpack.c.l.b16 %v432
        %v449 = vunpack.c.l.b16 %v433
        %v450 = vunpack.c.l.b16 %v434
        %v451 = vunpack.c.l.b16 %v435
        %v452 = vunpack.c.l.b16 %v436
        %v453 = vunpack.c.l.b16 %v437
        %v454 = vpack.c.b16 %v447, %v446
        %v455 = vpack.c.b16 %v449, %v448
        %v456 = vpack.c.b16 %v451, %v450
        %v457 = vpack.c.b16 %v453, %v452
        %v463 = vsel %vm313, %v428, 0
        %465 = vmatprep.subr.bf16.mxu0 0
        %466 = vmatpush1.bf16.msra.mxu0 %v454
        %467 = vmatprep.subr.bf16.mxu0 0
        %468 = vmatpush1.bf16.msra.mxu0 %v455
        %469 = vmatprep.subr.bf16.mxu0 0
        %470 = vmatpush1.bf16.msra.mxu0 %v456
        %471 = vmatprep.subr.bf16.mxu0 0
        %472 = vmatpush1.bf16.msra.mxu0 %v457
        %473 = vmatprep.subr.bf16.mxu0 0
        %474 = vmatpush1.bf16.msra.mxu0 0
        %475 = vmatprep.subr.bf16.mxu0 0
        %476 = vmatpush1.bf16.msra.mxu0 0
        %477 = vmatprep.subr.bf16.mxu0 0
        %478 = vmatpush1.bf16.msra.mxu0 0
        %479 = vmatprep.subr.bf16.mxu0 0
        %480 = vmatpush1.bf16.msra.mxu0 0
        %481 = vmatprep.subr.bf16.mxu0 0
        %482 = vmatpush1.bf16.msra.mxu0 0
        %483 = vmatprep.subr.bf16.mxu0 0
        %484 = vmatpush1.bf16.msra.mxu0 0
        %485 = vmatprep.subr.bf16.mxu0 0
        %486 = vmatpush1.bf16.msra.mxu0 0
        %487 = vmatprep.subr.bf16.mxu0 0
        %488 = vmatpush1.bf16.msra.mxu0 0
        %489 = vmatprep.subr.bf16.mxu0 0
        %490 = vmatpush1.bf16.msra.mxu0 0
        %491 = vmatprep.subr.bf16.mxu0 0
        %492 = vmatpush1.bf16.msra.mxu0 0
        %493 = vmatprep.subr.bf16.mxu0 0
        %494 = vmatpush1.bf16.msra.mxu0 0
        %495 = vmatprep.subr.bf16.mxu0 0
        %496 = vmatpush1.bf16.msra.mxu0 0
        %497 = vmatprep.mubr.bf16.mxu0 0
        %498 = vmatmul.mubr.bf16.gmra.mrb[0].mxu0 %v463
        %v499 = vpop.f32.mrb[0].mxu0
        %v500 = vadd.f32 0.0, %v499
        %v501 = vpop.f32.mrb[0].mxu0
        %v502 = vpop.f32.mrb[0].mxu0
        %v503 = vadd.f32 0.0, %v502
        %v504 = vpop.f32.mrb[0].mxu0
        %505 = vdwg.mxu0
        %v506 = vadd.f32 %v420, %v500
        %v507 = vadd.f32 %v423, %v503
        %v508 = vld [vmem:[%s5] sm:$0x1]
        %v509 = vlaneseq
        %v510 = vshrl.u32 %v509, 7
        %v511 = vsub.s32 0, %v510
        %v512 = vrot.slane %v508, %v511
        %v513 = vadd.f32 %v506, %v512
        %v514 = vadd.f32 %v507, %v512
        %v515 = vmax.f32 %v513, 0.0
        %v516 = vmax.f32 %v514, 0.0
        %vm517 = vcmask 516096
        %518 = vst.msk [vmem:[#allocation2] sm:$0x1] %vm517, 0.0
        %519 = vst.msk [vmem:[#allocation2 + $0x11] sm:$0x1] %vm517, 0.0
        %520 = vst.msk [vmem:[#allocation2 + $0x1] sm:$0xff] %vm313, %v515
        %521 = vst.msk [vmem:[#allocation2 + $0x9] sm:$0xff] %vm313, %v516
        %v522 = vld [vmem:[#allocation2] sm:$0xff]
        %v523 = vld [vmem:[#allocation2 + $0x8] sm:$0xff]
        %v524 = vpack.c.bf16 %v523, %v522
        %v525 = vld [vmem:[#allocation3] sm:$0xf]
        %v526 = vld [vmem:[#allocation3 + $0x4] sm:$0xf]
        %v527 = vld [vmem:[#allocation3 + $0x8] sm:$0xf]
        %v528 = vld [vmem:[#allocation3 + $0xc] sm:$0xf]
        %v529 = vld [vmem:[#allocation3 + $0x10] sm:$0xf]
        %v530 = vld [vmem:[#allocation3 + $0x14] sm:$0xf]
        %v531 = vld [vmem:[#allocation3 + $0x18] sm:$0xf]
        %v532 = vld [vmem:[#allocation3 + $0x1c] sm:$0xf]
        %v533 = vld [vmem:[#allocation2 + $0x1] sm:$0xff]
        %v534 = vld [vmem:[#allocation2 + $0x9] sm:$0xff]
        %v535 = vpack.c.bf16 %v534, %v533
        %s536 = scalar_lea.vmem [#allocation3], 32
        %v537 = vld [vmem:[%s536] sm:$0xf]
        %v538 = vld [vmem:[%s536 + $0x4] sm:$0xf]
        %v539 = vld [vmem:[%s536 + $0x8] sm:$0xf]
        %v540 = vld [vmem:[%s536 + $0xc] sm:$0xf]
        %v541 = vld [vmem:[%s536 + $0x10] sm:$0xf]
        %v542 = vld [vmem:[%s536 + $0x14] sm:$0xf]
        %v543 = vld [vmem:[%s536 + $0x18] sm:$0xf]
        %v544 = vld [vmem:[%s536 + $0x1c] sm:$0xf]
        %v553 = vunpack.c.l.b16 %v537
        %v554 = vunpack.c.l.b16 %v538
        %v555 = vunpack.c.l.b16 %v539
        %v556 = vunpack.c.l.b16 %v540
        %v557 = vunpack.c.l.b16 %v541
        %v558 = vunpack.c.l.b16 %v542
        %v559 = vunpack.c.l.b16 %v543
        %v560 = vunpack.c.l.b16 %v544
        %v561 = vpack.c.b16 %v554, %v553
        %v562 = vpack.c.b16 %v556, %v555
        %v563 = vpack.c.b16 %v558, %v557
        %v564 = vpack.c.b16 %v560, %v559
        %v570 = vsel %vm313, %v535, 0
        %572 = vmatprep.subr.bf16.mxu0 0
        %573 = vmatpush1.bf16.msra.mxu0 %v561
        %574 = vmatprep.subr.bf16.mxu0 0
        %575 = vmatpush1.bf16.msra.mxu0 %v562
        %576 = vmatprep.subr.bf16.mxu0 0
        %577 = vmatpush1.bf16.msra.mxu0 %v563
        %578 = vmatprep.subr.bf16.mxu0 0
        %579 = vmatpush1.bf16.msra.mxu0 %v564
        %580 = vmatprep.subr.bf16.mxu0 0
        %581 = vmatpush1.bf16.msra.mxu0 0
        %582 = vmatprep.subr.bf16.mxu0 0
        %583 = vmatpush1.bf16.msra.mxu0 0
        %584 = vmatprep.subr.bf16.mxu0 0
        %585 = vmatpush1.bf16.msra.mxu0 0
        %586 = vmatprep.subr.bf16.mxu0 0
        %587 = vmatpush1.bf16.msra.mxu0 0
        %588 = vmatprep.subr.bf16.mxu0 0
        %589 = vmatpush1.bf16.msra.mxu0 0
        %590 = vmatprep.subr.bf16.mxu0 0
        %591 = vmatpush1.bf16.msra.mxu0 0
        %592 = vmatprep.subr.bf16.mxu0 0
        %593 = vmatpush1.bf16.msra.mxu0 0
        %594 = vmatprep.subr.bf16.mxu0 0
        %595 = vmatpush1.bf16.msra.mxu0 0
        %596 = vmatprep.subr.bf16.mxu0 0
        %597 = vmatpush1.bf16.msra.mxu0 0
        %598 = vmatprep.subr.bf16.mxu0 0
        %599 = vmatpush1.bf16.msra.mxu0 0
        %600 = vmatprep.subr.bf16.mxu0 0
        %601 = vmatpush1.bf16.msra.mxu0 0
        %602 = vmatprep.subr.bf16.mxu0 0
        %603 = vmatpush1.bf16.msra.mxu0 0
        %604 = vmatprep.mubr.bf16.mxu0 0
        %605 = vmatmul.mubr.bf16.gmra.mrb[0].mxu0 %v570
        %v606 = vpop.f32.mrb[0].mxu0
        %v607 = vadd.f32 0.0, %v606
        %v608 = vpop.f32.mrb[0].mxu0
        %v609 = vpop.f32.mrb[0].mxu0
        %v610 = vadd.f32 0.0, %v609
        %v611 = vpop.f32.mrb[0].mxu0
        %612 = vdwg.mxu0
        %v621 = vunpack.c.l.b16 %v525
        %v622 = vunpack.c.l.b16 %v526
        %v623 = vunpack.c.l.b16 %v527
        %v624 = vunpack.c.l.b16 %v528
        %v625 = vunpack.c.l.b16 %v529
        %v626 = vunpack.c.l.b16 %v530
        %v627 = vunpack.c.l.b16 %v531
        %v628 = vunpack.c.l.b16 %v532
        %v629 = vpack.c.b16 %v622, %v621
        %v630 = vpack.c.b16 %v624, %v623
        %v631 = vpack.c.b16 %v626, %v625
        %v632 = vpack.c.b16 %v628, %v627
        %v638 = vsel %vm313, %v524, 0
        %640 = vmatprep.subr.bf16.mxu0 0
        %641 = vmatpush1.bf16.msra.mxu0 %v629
        %642 = vmatprep.subr.bf16.mxu0 0
        %643 = vmatpush1.bf16.msra.mxu0 %v630
        %644 = vmatprep.subr.bf16.mxu0 0
        %645 = vmatpush1.bf16.msra.mxu0 %v631
        %646 = vmatprep.subr.bf16.mxu0 0
        %647 = vmatpush1.bf16.msra.mxu0 %v632
        %648 = vmatprep.subr.bf16.mxu0 0
        %649 = vmatpush1.bf16.msra.mxu0 0
        %650 = vmatprep.subr.bf16.mxu0 0
        %651 = vmatpush1.bf16.msra.mxu0 0
        %652 = vmatprep.subr.bf16.mxu0 0
        %653 = vmatpush1.bf16.msra.mxu0 0
        %654 = vmatprep.subr.bf16.mxu0 0
        %655 = vmatpush1.bf16.msra.mxu0 0
        %656 = vmatprep.subr.bf16.mxu0 0
        %657 = vmatpush1.bf16.msra.mxu0 0
        %658 = vmatprep.subr.bf16.mxu0 0
        %659 = vmatpush1.bf16.msra.mxu0 0
        %660 = vmatprep.subr.bf16.mxu0 0
        %661 = vmatpush1.bf16.msra.mxu0 0
        %662 = vmatprep.subr.bf16.mxu0 0
        %663 = vmatpush1.bf16.msra.mxu0 0
        %664 = vmatprep.subr.bf16.mxu0 0
        %665 = vmatpush1.bf16.msra.mxu0 0
        %666 = vmatprep.subr.bf16.mxu0 0
        %667 = vmatpush1.bf16.msra.mxu0 0
        %668 = vmatprep.subr.bf16.mxu0 0
        %669 = vmatpush1.bf16.msra.mxu0 0
        %670 = vmatprep.subr.bf16.mxu0 0
        %671 = vmatpush1.bf16.msra.mxu0 0
        %672 = vmatprep.mubr.bf16.mxu0 0
        %673 = vmatmul.mubr.bf16.gmra.mrb[0].mxu0 %v638
        %v674 = vpop.f32.mrb[0].mxu0
        %v675 = vadd.f32 %v607, %v674
        %v676 = vpop.f32.mrb[0].mxu0
        %v677 = vpop.f32.mrb[0].mxu0
        %v678 = vadd.f32 %v610, %v677
        %v679 = vpop.f32.mrb[0].mxu0
        %680 = vdwg.mxu0
        %v681 = vld [vmem:[#allocation2 + $0x2] sm:$0xff]
        %v682 = vld [vmem:[#allocation2 + $0xa] sm:$0xff]
        %v683 = vpack.c.bf16 %v682, %v681
        %s684 = scalar_lea.vmem [#allocation3], 64
        %v685 = vld [vmem:[%s684] sm:$0xf]
        %v686 = vld [vmem:[%s684 + $0x4] sm:$0xf]
        %v687 = vld [vmem:[%s684 + $0x8] sm:$0xf]
        %v688 = vld [vmem:[%s684 + $0xc] sm:$0xf]
        %v689 = vld [vmem:[%s684 + $0x10] sm:$0xf]
        %v690 = vld [vmem:[%s684 + $0x14] sm:$0xf]
        %v691 = vld [vmem:[%s684 + $0x18] sm:$0xf]
        %v692 = vld [vmem:[%s684 + $0x1c] sm:$0xf]
        %v701 = vunpack.c.l.b16 %v685
        %v702 = vunpack.c.l.b16 %v686
        %v703 = vunpack.c.l.b16 %v687
        %v704 = vunpack.c.l.b16 %v688
        %v705 = vunpack.c.l.b16 %v689
        %v706 = vunpack.c.l.b16 %v690
        %v707 = vunpack.c.l.b16 %v691
        %v708 = vunpack.c.l.b16 %v692
        %v709 = vpack.c.b16 %v702, %v701
        %v710 = vpack.c.b16 %v704, %v703
        %v711 = vpack.c.b16 %v706, %v705
        %v712 = vpack.c.b16 %v708, %v707
        %v718 = vsel %vm313, %v683, 0
        %720 = vmatprep.subr.bf16.mxu0 0
        %721 = vmatpush1.bf16.msra.mxu0 %v709
        %722 = vmatprep.subr.bf16.mxu0 0
        %723 = vmatpush1.bf16.msra.mxu0 %v710
        %724 = vmatprep.subr.bf16.mxu0 0
        %725 = vmatpush1.bf16.msra.mxu0 %v711
        %726 = vmatprep.subr.bf16.mxu0 0
        %727 = vmatpush1.bf16.msra.mxu0 %v712
        %728 = vmatprep.subr.bf16.mxu0 0
        %729 = vmatpush1.bf16.msra.mxu0 0
        %730 = vmatprep.subr.bf16.mxu0 0
        %731 = vmatpush1.bf16.msra.mxu0 0
        %732 = vmatprep.subr.bf16.mxu0 0
        %733 = vmatpush1.bf16.msra.mxu0 0
        %734 = vmatprep.subr.bf16.mxu0 0
        %735 = vmatpush1.bf16.msra.mxu0 0
        %736 = vmatprep.subr.bf16.mxu0 0
        %737 = vmatpush1.bf16.msra.mxu0 0
        %738 = vmatprep.subr.bf16.mxu0 0
        %739 = vmatpush1.bf16.msra.mxu0 0
        %740 = vmatprep.subr.bf16.mxu0 0
        %741 = vmatpush1.bf16.msra.mxu0 0
        %742 = vmatprep.subr.bf16.mxu0 0
        %743 = vmatpush1.bf16.msra.mxu0 0
        %744 = vmatprep.subr.bf16.mxu0 0
        %745 = vmatpush1.bf16.msra.mxu0 0
        %746 = vmatprep.subr.bf16.mxu0 0
        %747 = vmatpush1.bf16.msra.mxu0 0
        %748 = vmatprep.subr.bf16.mxu0 0
        %749 = vmatpush1.bf16.msra.mxu0 0
        %750 = vmatprep.subr.bf16.mxu0 0
        %751 = vmatpush1.bf16.msra.mxu0 0
        %752 = vmatprep.mubr.bf16.mxu0 0
        %753 = vmatmul.mubr.bf16.gmra.mrb[0].mxu0 %v718
        %v754 = vpop.f32.mrb[0].mxu0
        %v755 = vadd.f32 0.0, %v754
        %v756 = vpop.f32.mrb[0].mxu0
        %v757 = vpop.f32.mrb[0].mxu0
        %v758 = vadd.f32 0.0, %v757
        %v759 = vpop.f32.mrb[0].mxu0
        %760 = vdwg.mxu0
        %v761 = vadd.f32 %v675, %v755
        %v762 = vadd.f32 %v678, %v758
        %v763 = vld [vmem:[%s5 + $0x1] sm:$0x1]
        %v764 = vlaneseq
        %v765 = vshrl.u32 %v764, 7
        %v766 = vsub.s32 0, %v765
        %v767 = vrot.slane %v763, %v766
        %v768 = vadd.f32 %v761, %v767
        %v769 = vadd.f32 %v762, %v767
        %v770 = vsel %vm313, %v768, 0.0
        %v771 = vsel %vm313, %v769, 0.0
        %v772 = vadd.f32 %v770, %v771
        %v773 = vrot.slane %v772, 4
        %v774 = vadd.f32 %v772, %v773
        %v775 = vrot.slane %v774, 2
        %v776 = vadd.f32 %v774, %v775
        %v777 = vrot.slane %v776, 1
        %v778 = vadd.f32 %v776, %v777
        %v779 = vld [vmem:[%s3] sm:$0xff]
        %v780 = vld [vmem:[%s3 + $0x8] sm:$0xff]
        %v781 = vld [vmem:[%s3 + $0x10] sm:$0xff]
        %v782 = vld [vmem:[%s3 + $0x18] sm:$0xff]
        %v783 = vld [vmem:[%s3 + $0x20] sm:$0xff]
        %v784 = vld [vmem:[%s3 + $0x28] sm:$0xff]
        %v785 = vld [vmem:[%s3 + $0x30] sm:$0xff]
        %v786 = vld [vmem:[%s3 + $0x38] sm:$0xff]
        %v787 = vld [vmem:[%s5 + $0x3] sm:$0x1]
        %v789 = vsel %vm313, %v778, 0
        %791 = vmatprep.subr.mxu0 0.0
        %792 = vmatpush1.msra.mxu0 %v779
        %793 = vmatprep.subr.mxu0 0.0
        %794 = vmatpush1.msra.mxu0 %v780
        %795 = vmatprep.subr.mxu0 0.0
        %796 = vmatpush1.msra.mxu0 %v781
        %797 = vmatprep.subr.mxu0 0.0
        %798 = vmatpush1.msra.mxu0 %v782
        %799 = vmatprep.subr.mxu0 0.0
        %800 = vmatpush1.msra.mxu0 %v783
        %801 = vmatprep.subr.mxu0 0.0
        %802 = vmatpush1.msra.mxu0 %v784
        %803 = vmatprep.subr.mxu0 0.0
        %804 = vmatpush1.msra.mxu0 %v785
        %805 = vmatprep.subr.mxu0 0.0
        %806 = vmatpush1.msra.mxu0 %v786
        %807 = vmatprep.subr.mxu0 0.0
        %808 = vmatpush1.msra.mxu0 0.0
        %809 = vmatprep.subr.mxu0 0.0
        %810 = vmatpush1.msra.mxu0 0.0
        %811 = vmatprep.subr.mxu0 0.0
        %812 = vmatpush1.msra.mxu0 0.0
        %813 = vmatprep.subr.mxu0 0.0
        %814 = vmatpush1.msra.mxu0 0.0
        %815 = vmatprep.subr.mxu0 0.0
        %816 = vmatpush1.msra.mxu0 0.0
        %817 = vmatprep.subr.mxu0 0.0
        %818 = vmatpush1.msra.mxu0 0.0
        %819 = vmatprep.subr.mxu0 0.0
        %820 = vmatpush1.msra.mxu0 0.0
        %821 = vmatprep.subr.mxu0 0.0
        %822 = vmatpush1.msra.mxu0 0.0
        %823 = vmatprep.subr.mxu0 0.0
        %824 = vmatpush1.msra.mxu0 0.0
        %825 = vmatprep.subr.mxu0 0.0
        %826 = vmatpush1.msra.mxu0 0.0
        %827 = vmatprep.subr.mxu0 0.0
        %828 = vmatpush1.msra.mxu0 0.0
        %829 = vmatprep.subr.mxu0 0.0
        %830 = vmatpush1.msra.mxu0 0.0
        %831 = vmatprep.subr.mxu0 0.0
        %832 = vmatpush1.msra.mxu0 0.0
        %833 = vmatprep.subr.mxu0 0.0
        %834 = vmatpush1.msra.mxu0 0.0
        %835 = vmatprep.subr.mxu0 0.0
        %836 = vmatpush1.msra.mxu0 0.0
        %837 = vmatprep.subr.mxu0 0.0
        %838 = vmatpush1.msra.mxu0 0.0
        %839 = vmatprep.subr.mxu0 0.0
        %840 = vmatpush1.msra.mxu0 0.0
        %841 = vmatprep.subr.mxu0 0.0
        %842 = vmatpush1.msra.mxu0 0.0
        %843 = vmatprep.subr.mxu0 0.0
        %844 = vmatpush1.msra.mxu0 0.0
        %845 = vmatprep.subr.mxu0 0.0
        %846 = vmatpush1.msra.mxu0 0.0
        %847 = vmatprep.subr.mxu0 0.0
        %848 = vmatpush1.msra.mxu0 0.0
        %849 = vmatprep.subr.mxu0 0.0
        %850 = vmatpush1.msra.mxu0 0.0
        %851 = vmatprep.subr.mxu0 0.0
        %852 = vmatpush1.msra.mxu0 0.0
        %853 = vmatprep.subr.mxu0 0.0
        %854 = vmatpush1.msra.mxu0 0.0
        %855 = vmatprep.mubr.f32.mxu0 0.0
        %856 = vmatmul.mubr.f32.gmra.mrb[0].mxu0 %v789
        %v857 = vpop.f32.mrb[0].mxu0
        %v858 = vadd.f32 %v787, %v857
        %v859 = vpop.f32.mrb[0].mxu0
        %860 = vdwg.mxu0
        %v861 = vmax.f32 %v858, 0.0
        %v862 = vld [vmem:[%s4] sm:$0x1]
        %v863 = vld [vmem:[%s5 + $0x2] sm:$0x1]
        %vm864 = vcmask 7168
        %v866 = vsel %vm864, %v861, 0
        %vm868 = vcmask 1040384
        %v870 = vsel %vm868, %v862, 0
        %872 = vmatprep.subr.mxu0 0.0
        %873 = vmatpush1.msra.mxu0 %v870
        %874 = vmatprep.subr.mxu0 0.0
        %875 = vmatpush1.msra.mxu0 0.0
        %876 = vmatprep.subr.mxu0 0.0
        %877 = vmatpush1.msra.mxu0 0.0
        %878 = vmatprep.subr.mxu0 0.0
        %879 = vmatpush1.msra.mxu0 0.0
        %880 = vmatprep.subr.mxu0 0.0
        %881 = vmatpush1.msra.mxu0 0.0
        %882 = vmatprep.subr.mxu0 0.0
        %883 = vmatpush1.msra.mxu0 0.0
        %884 = vmatprep.subr.mxu0 0.0
        %885 = vmatpush1.msra.mxu0 0.0
        %886 = vmatprep.subr.mxu0 0.0
        %887 = vmatpush1.msra.mxu0 0.0
        %888 = vmatprep.subr.mxu0 0.0
        %889 = vmatpush1.msra.mxu0 0.0
        %890 = vmatprep.subr.mxu0 0.0
        %891 = vmatpush1.msra.mxu0 0.0
        %892 = vmatprep.subr.mxu0 0.0
        %893 = vmatpush1.msra.mxu0 0.0
        %894 = vmatprep.subr.mxu0 0.0
        %895 = vmatpush1.msra.mxu0 0.0
        %896 = vmatprep.subr.mxu0 0.0
        %897 = vmatpush1.msra.mxu0 0.0
        %898 = vmatprep.subr.mxu0 0.0
        %899 = vmatpush1.msra.mxu0 0.0
        %900 = vmatprep.subr.mxu0 0.0
        %901 = vmatpush1.msra.mxu0 0.0
        %902 = vmatprep.subr.mxu0 0.0
        %903 = vmatpush1.msra.mxu0 0.0
        %904 = vmatprep.subr.mxu0 0.0
        %905 = vmatpush1.msra.mxu0 0.0
        %906 = vmatprep.subr.mxu0 0.0
        %907 = vmatpush1.msra.mxu0 0.0
        %908 = vmatprep.subr.mxu0 0.0
        %909 = vmatpush1.msra.mxu0 0.0
        %910 = vmatprep.subr.mxu0 0.0
        %911 = vmatpush1.msra.mxu0 0.0
        %912 = vmatprep.subr.mxu0 0.0
        %913 = vmatpush1.msra.mxu0 0.0
        %914 = vmatprep.subr.mxu0 0.0
        %915 = vmatpush1.msra.mxu0 0.0
        %916 = vmatprep.subr.mxu0 0.0
        %917 = vmatpush1.msra.mxu0 0.0
        %918 = vmatprep.subr.mxu0 0.0
        %919 = vmatpush1.msra.mxu0 0.0
        %920 = vmatprep.subr.mxu0 0.0
        %921 = vmatpush1.msra.mxu0 0.0
        %922 = vmatprep.subr.mxu0 0.0
        %923 = vmatpush1.msra.mxu0 0.0
        %924 = vmatprep.subr.mxu0 0.0
        %925 = vmatpush1.msra.mxu0 0.0
        %926 = vmatprep.subr.mxu0 0.0
        %927 = vmatpush1.msra.mxu0 0.0
        %928 = vmatprep.subr.mxu0 0.0
        %929 = vmatpush1.msra.mxu0 0.0
        %930 = vmatprep.subr.mxu0 0.0
        %931 = vmatpush1.msra.mxu0 0.0
        %932 = vmatprep.subr.mxu0 0.0
        %933 = vmatpush1.msra.mxu0 0.0
        %934 = vmatprep.subr.mxu0 0.0
        %935 = vmatpush1.msra.mxu0 0.0
        %936 = vmatprep.mubr.f32.mxu0 0.0
        %937 = vmatmul.mubr.f32.gmra.mrb[0].mxu0 %v866
        %v938 = vpop.f32.mrb[0].mxu0
        %v939 = vadd.f32 %v863, %v938
        %v940 = vpop.f32.mrb[0].mxu0
        %941 = vdwg.mxu0
        %v942 = vxor.u32 %v939, 2147483648
        %v943 = vmul.f32 %v942, 1.442695
        %v944 = vpow.pop %v943
        %v945 = vadd.f32 %v944, 1.0
        %v946 = vrcp.pop %v945
        %v947 = vmul.f32 1.0, %v946
        %v948 = vlaneseq
        %v949 = vshrl.u32 %v948, 7
        %v950 = vsub.s32 0, %v949
        %v951 = vrot.slane %v947, %v950
        %v952 = vmul.f32 %v768, %v951
        %v953 = vmul.f32 %v769, %v951
        %v954 = vld [vmem:[%s264 + $0x1] sm:$0xff]
        %v955 = vld [vmem:[%s264 + $0x9] sm:$0xff]
        %v956 = vadd.f32 %v952, %v954
        %v957 = vadd.f32 %v953, %v955
        %v958 = vmax.f32 %v956, 0.0
        %v959 = vmax.f32 %v957, 0.0
        %960 = vst.msk [vmem:[%s259] sm:$0xff] %vm313, %v958
        %961 = vst.msk [vmem:[%s259 + $0x8] sm:$0xff] %vm313, %v959
        %s962 = sand.u32 %s160, 1
        %s963 = scalar_lea.sflag [#allocation5], %s962
        %s964 = sand.u32 %s160, 1
        %s965 = smul.addr %s964, 16
        %s966 = scalar_lea.vmem [#allocation6], %s965
        // Predicated region
        $region49: #{tpu_custom_call.1} parent=43 // pred_check
          %p967 = pneg %p170
        $region50: #{tpu_custom_call.1} parent=43 // pred_check_branch
          %969 = sbr.rel (%p967) target = $region52
        $region51: #{tpu_custom_call.1} parent=43 // pred_region
          %s971 = ssub.s32 256, 256
          %972 = vsyncadd %s963, %s971
          %s973 = smul.addr %s21, 2
          %s974 = smul.addr %s973, 128
          %s975 = scalar_lea.hbm %s6, %s974
          %s976 = sshll.u32 %s966, 4
          %s977 = int_to_ptr.vmem [resolvable:$true] %s976
          %982 = dma.vmem_to_hbm [thread:$0]  %s977, 256, %s975, %s963, 128, 128, 8
        $region52: #{tpu_custom_call.1} parent=43 // pred_fallthru
          _
      $region44: #{tpu_custom_call.1} parent=5 // pred_fallthru
        _
      %p983 = scmp.le.s32.totalorder 2, %s16
      // Predicated region
      $region53: #{tpu_custom_call.1} parent=5 // pred_check
        %p984 = pneg %p983
      $region54: #{tpu_custom_call.1} parent=5 // pred_check_branch
        %986 = sbr.rel (%p984) target = $region56
      $region55: #{tpu_custom_call.1} parent=5 // pred_region
        %s987 = ssub.s32 %s16, 2
        // Predicated region
        $region57: #{tpu_custom_call.1} parent=55 // pred_check
          %p988 = pneg %p176
        $region58: #{tpu_custom_call.1} parent=55 // pred_check_branch
          %990 = sbr.rel (%p988) target = $region60
        $region59: #{tpu_custom_call.1} parent=55 // pred_region
          %s991 = sand.u32 %s161, 1
          %s992 = scalar_lea.sflag [#allocation5], %s991
          %s993 = sand.u32 %s161, 1
          %s994 = smul.addr %s993, 16
          %s995 = scalar_lea.vmem [#allocation6], %s994
          %996 = dma.done %s992, 256
        $region60: #{tpu_custom_call.1} parent=55 // pred_fallthru
          _
      $region56: #{tpu_custom_call.1} parent=5 // pred_fallthru
        _
    $region6: #{tpu_custom_call.1} parent=1 // loop_footer
      %s20 = sadd.s32 1, %s16
    $region7: #{tpu_custom_call.1} parent=1 // loop_footer_branch
      %15 = sbr.rel target = $region3
    $region8: #{tpu_custom_call.1} parent=1 // loop_exit
      _
    %997 = vsyncpa [#allocation4], 1
    %s998 = scalar_lea.sflag [#allocation4], 1
    %999 = vsyncpa %s998, 1
    %1000 = vsyncpa [#allocation5], 1
    %s1001 = scalar_lea.sflag [#allocation5], 1
    %1002 = vsyncpa %s1001, 1

</llo_original>
